<compile_context>
chip_gen: v7x
topology: tpu7x:2x2x1
jax: 0.10.0
libtpu: 0.0.40
codegen_flags: <defaults>
</compile_context>

<pallas_src>
import math

import jax
import jax.numpy as jnp
from jax.experimental import pallas as pl
from jax.experimental.pallas import tpu as pltpu


_LANE = 128
_VMEM_LIMIT_BYTES = 32 * 1024 * 1024   # safe: v5e/v6e 128 MiB physical, v7x 64 MiB
_MIN_GRID_STEPS = 4                     # keep pipeline busy / both v7x TCs fed


# ------------------------- kernels -------------------------

def _fused_bn_3d_kernel(x_ref, w_ref, b_ref, o_ref):
    # x_ref: (1, tc, tt); w_ref/b_ref: (tc, 1) f32 -> broadcast over batch & T.
    x = x_ref[...].astype(jnp.float32)
    o_ref[...] = (x * w_ref[...] + b_ref[...]).astype(o_ref.dtype)


def _fused_bn_2d_kernel(x_ref, w_ref, b_ref, o_ref):
    # x_ref: (tn, tc); w_ref/b_ref: (1, tc) f32 -> broadcast over batch rows.
    x = x_ref[...].astype(jnp.float32)
    o_ref[...] = (x * w_ref[...] + b_ref[...]).astype(o_ref.dtype)


# ------------------------- tile sizing -------------------------

def _sublane_quantum(itemsize: int) -> int:
    return {4: 8, 2: 16, 1: 32}.get(itemsize, 8)


def _block_budget_bytes() -> int:
    """Per-block VMEM budget, generation-gated.

    The pipeline holds ~2 buffers x (in + out) = 4x the block plus params and
    Mosaic internal scratch; with vmem_limit_bytes = 32 MiB this leaves clear
    headroom on every generation.
    """
    try:
        kind = jax.devices()[0].device_kind.lower()
    except Exception:
        kind = ""
    if "v6" in kind:
        return 6 * 1024 * 1024        # ~24 MiB pipelined, under the 32 MiB limit
    return 3 * 1024 * 1024            # v5e / v7x / unknown: ~12 MiB pipelined


def _split_axis(length: int, unit: int, max_tile: int, min_steps: int) -> int:
    """Tile `length` in multiples of `unit`, <= max_tile, aiming for at least
    `min_steps` grid steps (full axis only if it fits AND no split is needed)."""
    if length <= unit:
        return length
    if min_steps <= 1 and length <= max_tile:
        return length
    steps = max(min_steps, pl.cdiv(length, max_tile))
    per = length // steps
    tile = (per // unit * unit) if per >= unit else unit
    return max(unit, min(tile, max_tile))


def _plan_3d(n, c, t, itemsize, budget):
    sub = _sublane_quantum(itemsize)
    # Channel tile (sublane axis): full C unless even a single (C, 128) strip
    # blows the budget (pathologically large C).
    if c * _LANE * itemsize <= budget or c <= sub:
        tc = c
    else:
        tc = max(sub, (budget // (_LANE * itemsize)) // sub * sub)
    c_steps = pl.cdiv(c, tc)

    # Time tile (lane axis): multiple of 128, sized to the budget, and split so
    # the total grid has >= _MIN_GRID_STEPS iterations (pipelining + v7x
    # TensorCore balance) even when the whole T would fit in one block.
    max_tt = max(_LANE, (budget // max(1, tc * itemsize)) // _LANE * _LANE)
    want_t = max(1, math.ceil(_MIN_GRID_STEPS / (n * c_steps)))
    tt = _split_axis(t, _LANE, max_tt, want_t)
    t_steps = pl.cdiv(t, tt)
    return tc, c_steps, tt, t_steps


def _plan_2d(n, c, itemsize, budget):
    sub = _sublane_quantum(itemsize)
    # Channel tile (lane axis): full C unless a single (sub, C) strip blows the
    # budget; channel tiles are multiples of 128.
    if c * sub * itemsize <= budget or c <= _LANE:
        tc = c
    else:
        tc = max(_LANE, (budget // (sub * itemsize)) // _LANE * _LANE)
    c_steps = pl.cdiv(c, tc)

    max_tn = max(sub, (budget // max(1, tc * itemsize)) // sub * sub)
    want_n = max(1, math.ceil(_MIN_GRID_STEPS / c_steps))
    tn = _split_axis(n, sub, max_tn, want_n)
    n_steps = pl.cdiv(n, tn)
    return tn, n_steps, tc, c_steps


def _lane_dense_factor(n: int, c: int) -> int:
    """Smallest k with (k*C) % 128 == 0, if N is divisible by k; else 1."""
    if c % _LANE == 0 or n <= 1:
        return 1
    k = _LANE // math.gcd(c, _LANE)
    return k if (k > 1 and n % k == 0) else 1


# ------------------------- wrapper -------------------------

def fused_batchnorm1d(x: jax.Array, weight: jax.Array, bias: jax.Array) -> jax.Array:
    """Drop-in replacement for FusedBatchNorm1d.forward."""
    num_features = weight.shape[0]
    itemsize = jnp.dtype(x.dtype).itemsize
    budget = _block_budget_bytes()

    if x.ndim == 3:
        n, c, t = x.shape
        assert c == num_features
        w2 = weight.reshape(c, 1).astype(jnp.float32)
        b2 = bias.reshape(c, 1).astype(jnp.float32)

        tc, c_steps, tt, t_steps = _plan_3d(n, c, t, itemsize, budget)

        numel = n * c * t
        cost = pl.CostEstimate(
            flops=2 * numel,
            transcendentals=0,
            bytes_accessed=2 * numel * itemsize + 2 * c * 4,
        )

        # Put the larger parallel axis first so v7x's two TensorCores both get
        # grid iterations even when N == 1; neutral on single-TC chips.
        if t_steps >= n:
            grid = (t_steps, c_steps, n)
            x_map = lambda j, ci, i: (i, ci, j)
            p_map = lambda j, ci, i: (ci, 0)
        else:
            grid = (n, c_steps, t_steps)
            x_map = lambda i, ci, j: (i, ci, j)
            p_map = lambda i, ci, j: (ci, 0)

        return pl.pallas_call(
            _fused_bn_3d_kernel,
            out_shape=jax.ShapeDtypeStruct((n, c, t), x.dtype),
            grid=grid,
            in_specs=[
                pl.BlockSpec((1, tc, tt), x_map),
                pl.BlockSpec((tc, 1), p_map),
                pl.BlockSpec((tc, 1), p_map),
            ],
            out_specs=pl.BlockSpec((1, tc, tt), x_map),
            compiler_params=pltpu.CompilerParams(
                dimension_semantics=("parallel", "parallel", "parallel"),
                vmem_limit_bytes=_VMEM_LIMIT_BYTES),
            cost_estimate=cost,
        )(x, w2, b2)

    assert x.ndim == 2
    n, c = x.shape
    assert c == num_features

    # Lane-dense view: fold k rows into one so the last (lane) axis of every
    # block is a multiple of 128 -> unmasked vector stores.  Row-major reshape,
    # so tiling weight/bias k times keeps the per-position affine exact.
    k = _lane_dense_factor(n, c)
    n2, c2 = n // k, c * k
    x2 = x.reshape(n2, c2) if k > 1 else x
    w_flat = weight.astype(jnp.float32)
    b_flat = bias.astype(jnp.float32)
    if k > 1:
        w_flat = jnp.tile(w_flat, k)
        b_flat = jnp.tile(b_flat, k)
    w2 = w_flat.reshape(1, c2)
    b2 = b_flat.reshape(1, c2)

    tn, n_steps, tc, c_steps = _plan_2d(n2, c2, itemsize, budget)

    numel = n * c
    cost = pl.CostEstimate(
        flops=2 * numel,
        transcendentals=0,
        bytes_accessed=2 * numel * itemsize + 2 * c2 * 4,
    )

    out = pl.pallas_call(
        _fused_bn_2d_kernel,
        out_shape=jax.ShapeDtypeStruct((n2, c2), x.dtype),
        grid=(n_steps, c_steps),
        in_specs=[
            pl.BlockSpec((tn, tc), lambda i, j: (i, j)),
            pl.BlockSpec((1, tc), lambda i, j: (0, j)),
            pl.BlockSpec((1, tc), lambda i, j: (0, j)),
        ],
        out_specs=pl.BlockSpec((tn, tc), lambda i, j: (i, j)),
        compiler_params=pltpu.CompilerParams(
            dimension_semantics=("parallel", "parallel"),
            vmem_limit_bytes=_VMEM_LIMIT_BYTES),
        cost_estimate=cost,
    )(x2, w2, b2)
    return out.reshape(n, c) if k > 1 else out


# ------------------------- demo / check -------------------------

if __name__ == "__main__":
    num_features = 4
    batch = 2
    seq = 16

    key = jax.random.PRNGKey(0)
    kx3, kx2, kw, kb, kx3b, kx2b = jax.random.split(key, 6)

    # Parameters (shapes from __init__: weight=ones(C), bias=zeros(C));
    # initialized with deterministic random values so the affine is non-trivial.
    weight = 1.0 + 0.1 * jax.random.normal(kw, (num_features,), dtype=jnp.float32)
    bias = 0.1 * jax.random.normal(kb, (num_features,), dtype=jnp.float32)

    # 3D input (N, C, T)
    x3 = jax.random.normal(kx3, (batch, num_features, seq), dtype=jnp.float32)
    out3 = jax.block_until_ready(fused_batchnorm1d(x3, weight, bias))
    ref3 = x3 * weight[None, :, None] + bias[None, :, None]
    assert jnp.allclose(out3, ref3, atol=1e-6, rtol=1e-6), "3D mismatch"

    # 2D input (N, C)
    x2 = jax.random.normal(kx2, (batch, num_features), dtype=jnp.float32)
    out2 = jax.block_until_ready(fused_batchnorm1d(x2, weight, bias))
    ref2 = x2 * weight[None, :] + bias[None, :]
    assert jnp.allclose(out2, ref2, atol=1e-6, rtol=1e-6), "2D mismatch"

    # Extra checks: Conformer-like C=80 with non-tile-aligned T (edge-block
    # masking) and a 2D shape that exercises the lane-dense k-fold path.
    cB = 80
    wB = 1.0 + 0.1 * jax.random.normal(kw, (cB,), dtype=jnp.float32)
    bB = 0.1 * jax.random.normal(kb, (cB,), dtype=jnp.float32)

    x3b = jax.random.normal(kx3b, (3, cB, 300), dtype=jnp.float32)
    out3b = jax.block_until_ready(fused_batchnorm1d(x3b, wB, bB))
    ref3b = x3b * wB[None, :, None] + bB[None, :, None]
    assert jnp.allclose(out3b, ref3b, atol=1e-6, rtol=1e-6), "3D(edge) mismatch"

    x2b = jax.random.normal(kx2b, (64, cB), dtype=jnp.float32)
    out2b = jax.block_until_ready(fused_batchnorm1d(x2b, wB, bB))
    ref2b = x2b * wB[None, :] + bB[None, :]
    assert jnp.allclose(out2b, ref2b, atol=1e-6, rtol=1e-6), "2D(lane-dense) mismatch"

    print("KERNEL_OK")
</pallas_src>

<mosaic_0001>
module attributes {stable_mosaic.version = 11 : i64} {
  func.func @_fused_bn_3d_kernel(%arg0: i32, %arg1: i32, %arg2: i32, %arg3: memref<1x4x16xf32, #tpu.memory_space<vmem>>, %arg4: memref<4x1xf32, #tpu.memory_space<vmem>>, %arg5: memref<4x1xf32, #tpu.memory_space<vmem>>, %arg6: memref<1x4x16xf32, #tpu.memory_space<vmem>>) attributes {dimension_semantics = [#tpu.dimension_semantics<parallel>, #tpu.dimension_semantics<parallel>, #tpu.dimension_semantics<parallel>], iteration_bounds = array<i64: 2, 1, 1>, scalar_prefetch = 0 : i64, scratch_operands = 0 : i64, tpu.core_type = #tpu.core_type<tc>, window_params = [{transform_indices = @transform_0, window_bounds = array<i64: 1, 4, 16>}, {transform_indices = @transform_1, window_bounds = array<i64: 4, 1>}, {transform_indices = @transform_2, window_bounds = array<i64: 4, 1>}, {transform_indices = @transform_3, window_bounds = array<i64: 1, 4, 16>}]} {
    %c0 = arith.constant 0 : index
    %c0_0 = arith.constant 0 : index
    %c0_1 = arith.constant 0 : index
    %0 = vector.load %arg3[%c0, %c0_0, %c0_1] : memref<1x4x16xf32, #tpu.memory_space<vmem>>, vector<1x4x16xf32>
    %c0_2 = arith.constant 0 : index
    %c0_3 = arith.constant 0 : index
    %1 = vector.load %arg4[%c0_2, %c0_3] : memref<4x1xf32, #tpu.memory_space<vmem>>, vector<4x1xf32>
    %2 = vector.shape_cast %1 : vector<4x1xf32> to vector<1x4x1xf32>
    %3 = vector.broadcast %2 : vector<1x4x1xf32> to vector<1x4x16xf32>
    %4 = arith.mulf %0, %3 : vector<1x4x16xf32>
    %c0_4 = arith.constant 0 : index
    %c0_5 = arith.constant 0 : index
    %5 = vector.load %arg5[%c0_4, %c0_5] : memref<4x1xf32, #tpu.memory_space<vmem>>, vector<4x1xf32>
    %6 = vector.shape_cast %5 : vector<4x1xf32> to vector<1x4x1xf32>
    %7 = vector.broadcast %6 : vector<1x4x1xf32> to vector<1x4x16xf32>
    %8 = arith.addf %4, %7 : vector<1x4x16xf32>
    %c0_6 = arith.constant 0 : index
    %c0_7 = arith.constant 0 : index
    %c0_8 = arith.constant 0 : index
    %9 = vector.load %arg6[%c0_6, %c0_7, %c0_8] : memref<1x4x16xf32, #tpu.memory_space<vmem>>, vector<1x4x16xf32>
    tpu.vector_store %arg6[%c0_6, %c0_7, %c0_8], %8 {strides = array<i32>} : memref<1x4x16xf32, #tpu.memory_space<vmem>>, vector<1x4x16xf32>,
    return
  }
  func.func @transform_0(%arg0: i32, %arg1: i32, %arg2: i32) -> (i32, i32, i32) {
    %c0_i32 = arith.constant 0 : i32
    return %arg0, %arg1, %arg2 : i32, i32, i32
  }
  func.func @transform_1(%arg0: i32, %arg1: i32, %arg2: i32) -> (i32, i32) {
    %c0_i32 = arith.constant 0 : i32
    %c0_i32_0 = arith.constant 0 : i32
    return %arg1, %c0_i32 : i32, i32
  }
  func.func @transform_2(%arg0: i32, %arg1: i32, %arg2: i32) -> (i32, i32) {
    %c0_i32 = arith.constant 0 : i32
    %c0_i32_0 = arith.constant 0 : i32
    return %arg1, %c0_i32 : i32, i32
  }
  func.func @transform_3(%arg0: i32, %arg1: i32, %arg2: i32) -> (i32, i32, i32) {
    %c0_i32 = arith.constant 0 : i32
    return %arg0, %arg1, %arg2 : i32, i32, i32
  }
}

</mosaic_0001>

<llo_original>
// kernel: tpu_custom_call.1
$region0: #{tpu_custom_call.1}
  #allocation0 [shape = 'u32[]', space=smem, size = 0x4, offset = 0x4, fixed_abs, tag = 'smem constant byte address 0x4 - core index']
  #allocation1 [shape = 'u32[144,128]{1,0:T(1,128)}', space=vmem, size = 0x12000, scoped, tag = 'internal scratch']
  %s0 = inlined_call_operand.vmem [shape: f32[2,4,16], index: 0, kind: input, shape index: {}]
  %s1 = inlined_call_operand.vmem [shape: f32[4,1], index: 1, kind: input, shape index: {}]
  %s2 = inlined_call_operand.vmem [shape: f32[4,1], index: 2, kind: input, shape index: {}]
  %s3 = inlined_call_operand.hbm [shape: f32[2,4,16], index: 3, kind: output, shape index: {}]
  %s4 = sld [smem:[#allocation0]]
  $region45: #{tpu_custom_call.1} parent=0
    _
  %s6 = ssub.s32 1, %s4
  %s7 = scalar_select 0, %s6, %s4
  $region1: #{tpu_custom_call.1} parent=0
    #allocation2 [shape = 'u8[4096]{0}', space=vmem, size = 0x1000, scoped, tag = 'output window, operand 0']
    #allocation3 [shape = 's32[2]{0}', space=sflag, size = 0x8, scoped, tag = 'scoped memory for tpu_custom_call.1']
    %8 = vsyncpa [#allocation3], 0
    %s9 = scalar_lea.sflag [#allocation3], 1
    %10 = vsyncpa %s9, 0
    loop: start=0, step=1, limit=4
    $region2: #{tpu_custom_call.1} parent=1 // loop_pre_header
      _
    $region3: #{tpu_custom_call.1} parent=1 // loop_header
      %s12 = sphi 0, %s16
      %p13 = scmp.ge.s32.totalorder %s12, 4
      %s19 = sphi 0, %s38
      %s20 = sphi 0, %s34
      %s21 = sphi 0, %s30
      %s22 = sphi 0, %s19
      %s23 = sphi 0, %s20
      %s24 = sphi 0, %s21
      %s25 = sphi 0, %s22
      %s26 = sphi 0, %s23
      %s27 = sphi 0, %s24
      %s45 = sphi 0, %s47
      %s48 = sphi 0, %s45
      %s49 = sphi 0, %s48
      %s65 = sphi 0, %s49
      %s71 = sphi 0, %s73
      %s74 = sphi 0, %s71
      %s75 = sphi 0, %s74
      %s91 = sphi 0, %s75
      %s97 = sphi 0, %s99
      %s100 = sphi 0, %s97
      %s101 = sphi 0, %s100
      %s117 = sphi 0, %s101
      %s127 = sphi 0, %s129
      %s130 = sphi 0, %s127
      %s131 = sphi 0, %s130
      %s147 = sphi 0, %s131
    $region4: #{tpu_custom_call.1} parent=1 // loop_header_branch
      %15 = sbr.rel (%p13) target = $region8
    $region5: #{tpu_custom_call.1} parent=1 // loop_body
      %s17 = ssub.s32 %s12, 1
      %s18 = ssub.s32 %s12, 2
      %s28 = sadd.s32 1, %s21
      %p29 = scmp.ge.s32.totalorder %s28, 1
      %s30 = scalar_select %p29, 0, %s28
      %s31 = sadd.s32 1, %s20
      %s32 = scalar_select %p29, %s31, %s20
      %p33 = scmp.ge.s32.totalorder %s32, 1
      %s34 = scalar_select %p33, 0, %s32
      %s35 = sadd.s32 1, %s19
      %s36 = scalar_select %p33, %s35, %s19
      %p37 = scmp.ge.s32.totalorder %s36, 2
      %s38 = scalar_select %p37, 0, %s36
      %s39 = ssub.s32 %s19, %s38
      %s40 = ssub.s32 %s20, %s34
      %s41 = sor.u32 %s39, %s40
      %s42 = ssub.s32 %s21, %s30
      %s43 = sor.u32 %s41, %s42
      %p44 = scmp.eq.s32.totalorder %s43, 0
      %s46 = sadd.s32 %s45, 1
      %s47 = scalar_select %p44, %s45, %s46
      %p50 = pneg %p44
      %p51 = scmp.eq.s32.totalorder %s12, 1
      %p52 = por %p50, %p51
      %p53 = scmp.ne.s32.totalorder %s45, %s48
      %p54 = scmp.eq.s32.totalorder %s12, 0
      %p55 = por %p53, %p54
      %p56 = scmp.ne.s32.totalorder %s45, %s48
      %p57 = scmp.eq.s32.totalorder %s17, 1
      %p58 = por %p56, %p57
      %p59 = scmp.ne.s32.totalorder %s48, %s49
      %p60 = scmp.eq.s32.totalorder %s17, 0
      %p61 = por %p59, %p60
      %p62 = scmp.ne.s32.totalorder %s48, %s49
      %p63 = scmp.eq.s32.totalorder %s18, 1
      %p64 = por %p62, %p63
      %p66 = scmp.ne.s32.totalorder %s49, %s65
      %p67 = scmp.eq.s32.totalorder %s18, 0
      %p68 = por %p66, %p67
      %s69 = ssub.s32 %s20, %s34
      %p70 = scmp.eq.s32.totalorder %s69, 0
      %s72 = sadd.s32 %s71, 1
      %s73 = scalar_select %p70, %s71, %s72
      %p76 = pneg %p70
      %p77 = scmp.eq.s32.totalorder %s12, 1
      %p78 = por %p76, %p77
      %p79 = scmp.ne.s32.totalorder %s71, %s74
      %p80 = scmp.eq.s32.totalorder %s12, 0
      %p81 = por %p79, %p80
      %p82 = scmp.ne.s32.totalorder %s71, %s74
      %p83 = scmp.eq.s32.totalorder %s17, 1
      %p84 = por %p82, %p83
      %p85 = scmp.ne.s32.totalorder %s74, %s75
      %p86 = scmp.eq.s32.totalorder %s17, 0
      %p87 = por %p85, %p86
      %p88 = scmp.ne.s32.totalorder %s74, %s75
      %p89 = scmp.eq.s32.totalorder %s18, 1
      %p90 = por %p88, %p89
      %p92 = scmp.ne.s32.totalorder %s75, %s91
      %p93 = scmp.eq.s32.totalorder %s18, 0
      %p94 = por %p92, %p93
      %s95 = ssub.s32 %s20, %s34
      %p96 = scmp.eq.s32.totalorder %s95, 0
      %s98 = sadd.s32 %s97, 1
      %s99 = scalar_select %p96, %s97, %s98
      %p102 = pneg %p96
      %p103 = scmp.eq.s32.totalorder %s12, 1
      %p104 = por %p102, %p103
      %p105 = scmp.ne.s32.totalorder %s97, %s100
      %p106 = scmp.eq.s32.totalorder %s12, 0
      %p107 = por %p105, %p106
      %p108 = scmp.ne.s32.totalorder %s97, %s100
      %p109 = scmp.eq.s32.totalorder %s17, 1
      %p110 = por %p108, %p109
      %p111 = scmp.ne.s32.totalorder %s100, %s101
      %p112 = scmp.eq.s32.totalorder %s17, 0
      %p113 = por %p111, %p112
      %p114 = scmp.ne.s32.totalorder %s100, %s101
      %p115 = scmp.eq.s32.totalorder %s18, 1
      %p116 = por %p114, %p115
      %p118 = scmp.ne.s32.totalorder %s101, %s117
      %p119 = scmp.eq.s32.totalorder %s18, 0
      %p120 = por %p118, %p119
      %s121 = ssub.s32 %s19, %s38
      %s122 = ssub.s32 %s20, %s34
      %s123 = sor.u32 %s121, %s122
      %s124 = ssub.s32 %s21, %s30
      %s125 = sor.u32 %s123, %s124
      %p126 = scmp.eq.s32.totalorder %s125, 0
      %s128 = sadd.s32 %s127, 1
      %s129 = scalar_select %p126, %s127, %s128
      %p132 = pneg %p126
      %p133 = scmp.eq.s32.totalorder %s12, 1
      %p134 = por %p132, %p133
      %p135 = scmp.ne.s32.totalorder %s127, %s130
      %p136 = scmp.eq.s32.totalorder %s12, 0
      %p137 = por %p135, %p136
      %p138 = scmp.ne.s32.totalorder %s127, %s130
      %p139 = scmp.eq.s32.totalorder %s17, 1
      %p140 = por %p138, %p139
      %p141 = scmp.ne.s32.totalorder %s130, %s131
      %p142 = scmp.eq.s32.totalorder %s17, 0
      %p143 = por %p141, %p142
      %p144 = scmp.ne.s32.totalorder %s130, %s131
      %p145 = scmp.eq.s32.totalorder %s18, 1
      %p146 = por %p144, %p145
      %p148 = scmp.ne.s32.totalorder %s131, %s147
      %p149 = scmp.eq.s32.totalorder %s18, 0
      %p150 = por %p148, %p149
      %p151 = scmp.le.s32.totalorder 1, %s12
      %p152 = scmp.lt.s32.totalorder %s12, 3
      %p153 = pnand %p151, %p152
      %p154 = pneg %p153
      // Predicated region
      $region9: #{tpu_custom_call.1} parent=5 // pred_check
        _
      $region10: #{tpu_custom_call.1} parent=5 // pred_check_branch
        %156 = sbr.rel (%p153) target = $region12
      $region11: #{tpu_custom_call.1} parent=5 // pred_region
        %s157 = ssub.s32 %s12, 1
        // Predicated region
        $region13: #{tpu_custom_call.1} parent=11 // pred_check
          %p158 = pneg %p87
        $region14: #{tpu_custom_call.1} parent=11 // pred_check_branch
          %160 = sbr.rel (%p158) target = $region16
        $region15: #{tpu_custom_call.1} parent=11 // pred_region
          %p161 = scmp.lt.s32.totalorder %s23, 0
          %s162 = scalar_select %p161, %s23, 0
          %s163 = smul.addr %s162, 4
          %s164 = scalar_lea.vmem %s1, %s163
        $region16: #{tpu_custom_call.1} parent=11 // pred_fallthru
          _
        // Predicated region
        $region17: #{tpu_custom_call.1} parent=11 // pred_check
          %p165 = pneg %p113
        $region18: #{tpu_custom_call.1} parent=11 // pred_check_branch
          %167 = sbr.rel (%p165) target = $region20
        $region19: #{tpu_custom_call.1} parent=11 // pred_region
          %p168 = scmp.lt.s32.totalorder %s23, 0
          %s169 = scalar_select %p168, %s23, 0
          %s170 = smul.addr %s169, 4
          %s171 = scalar_lea.vmem %s2, %s170
        $region20: #{tpu_custom_call.1} parent=11 // pred_fallthru
          _
      $region12: #{tpu_custom_call.1} parent=5 // pred_fallthru
        _
      %p172 = scmp.lt.s32.totalorder %s12, 2
      // Predicated region
      $region21: #{tpu_custom_call.1} parent=5 // pred_check
        %p173 = pneg %p172
      $region22: #{tpu_custom_call.1} parent=5 // pred_check_branch
        %175 = sbr.rel (%p173) target = $region24
      $region23: #{tpu_custom_call.1} parent=5 // pred_region
        // Predicated region
        $region25: #{tpu_custom_call.1} parent=23 // pred_check
          %p176 = pneg %p55
        $region26: #{tpu_custom_call.1} parent=23 // pred_check_branch
          %178 = sbr.rel (%p176) target = $region28
        $region27: #{tpu_custom_call.1} parent=23 // pred_region
          %p179 = scmp.lt.s32.totalorder %s19, 1
          %s180 = scalar_select %p179, %s19, 1
          %p181 = scmp.lt.s32.totalorder %s20, 0
          %s182 = scalar_select %p181, %s20, 0
          %p183 = scmp.lt.s32.totalorder %s21, 0
          %s184 = scalar_select %p183, %s21, 0
          %s185 = sadd.s32 %s184, %s182
          %s186 = sadd.s32 %s185, %s180
          %s187 = smul.addr %s186, 4
          %s188 = scalar_lea.vmem %s0, %s187
        $region28: #{tpu_custom_call.1} parent=23 // pred_fallthru
          _
      $region24: #{tpu_custom_call.1} parent=5 // pred_fallthru
        _
      %p189 = scmp.le.s32.totalorder 1, %s12
      %p190 = scmp.lt.s32.totalorder %s12, 3
      %p191 = pnand %p189, %p190
      %p192 = pneg %p191
      // Predicated region
      $region29: #{tpu_custom_call.1} parent=5 // pred_check
        _
      $region30: #{tpu_custom_call.1} parent=5 // pred_check_branch
        %194 = sbr.rel (%p191) target = $region32
      $region31: #{tpu_custom_call.1} parent=5 // pred_region
        %s195 = ssub.s32 %s12, 1
        %p196 = scmp.lt.s32.totalorder %s22, 1
        %s197 = scalar_select %p196, %s22, 1
        %p198 = scmp.lt.s32.totalorder %s23, 0
        %s199 = scalar_select %p198, %s23, 0
        %p200 = scmp.lt.s32.totalorder %s24, 0
        %s201 = scalar_select %p200, %s24, 0
        %s202 = sadd.s32 %s201, %s199
        %s203 = sadd.s32 %s202, %s197
        %s204 = smul.addr %s203, 4
        %s205 = scalar_lea.vmem %s0, %s204
        %p206 = pneg %p61
        %p207 = pneg %p58
        %p208 = scmp.lt.s32.totalorder %s23, 0
        %s209 = scalar_select %p208, %s23, 0
        %s210 = smul.addr %s209, 4
        %s211 = scalar_lea.vmem %s1, %s210
        %p212 = pneg %p87
        %p213 = pneg %p84
        %p214 = scmp.lt.s32.totalorder %s23, 0
        %s215 = scalar_select %p214, %s23, 0
        %s216 = smul.addr %s215, 4
        %s217 = scalar_lea.vmem %s2, %s216
        %p218 = pneg %p113
        %p219 = pneg %p110
        %p220 = pneg %p143
        %p221 = pneg %p140
        %s222 = sand.u32 %s130, 1
        %s223 = scalar_lea.sflag [#allocation3], %s222
        %s224 = sand.u32 %s130, 1
        %s225 = smul.addr %s224, 4
        %s226 = scalar_lea.vmem [#allocation2], %s225
        %p227 = scmp.lt.s32.totalorder %s22, 1
        %s228 = scalar_select %p227, %s22, 1
        %p229 = scmp.lt.s32.totalorder %s23, 0
        %s230 = scalar_select %p229, %s23, 0
        %p231 = scmp.lt.s32.totalorder %s24, 0
        %s232 = scalar_select %p231, %s24, 0
        %s233 = sadd.s32 %s232, %s230
        %s234 = sadd.s32 %s233, %s228
        %s235 = smul.addr %s234, 4
        %s236 = scalar_lea.vmem %s0, %s235
        %p237 = scmp.lt.s32.totalorder %s23, 0
        %s238 = scalar_select %p237, %s23, 0
        %s239 = smul.addr %s238, 4
        %s240 = scalar_lea.vmem %s1, %s239
        %p241 = scmp.lt.s32.totalorder %s23, 0
        %s242 = scalar_select %p241, %s23, 0
        %s243 = smul.addr %s242, 4
        %s244 = scalar_lea.vmem %s2, %s243
        %v245 = vld [vmem:[%s236] sm:$0xf]
        %v246 = vld [vmem:[%s240] sm:$0xf]
        %248 = vset.pattern.permute.xlu0 0
        %249 = vperm.xlu0 %248, %v246
        %v250 = vpop.permute.xlu0 %249
        %v252 = vmul.f32 %v245, %v250
        %v253 = vld [vmem:[%s244] sm:$0xf]
        %255 = vset.pattern.permute.xlu0 0
        %256 = vperm.xlu0 %255, %v253
        %v257 = vpop.permute.xlu0 %256
        %v259 = vadd.f32 %v252, %v257
        %vm260 = vcmask 125952
        %261 = vst.msk [vmem:[%s226] sm:$0xf] %vm260, %v259
        %s262 = sand.u32 %s130, 1
        %s263 = scalar_lea.sflag [#allocation3], %s262
        %s264 = sand.u32 %s130, 1
        %s265 = smul.addr %s264, 4
        %s266 = scalar_lea.vmem [#allocation2], %s265
        // Predicated region
        $region33: #{tpu_custom_call.1} parent=31 // pred_check
          %p267 = pneg %p140
        $region34: #{tpu_custom_call.1} parent=31 // pred_check_branch
          %269 = sbr.rel (%p267) target = $region36
        $region35: #{tpu_custom_call.1} parent=31 // pred_region
          %s271 = ssub.s32 64, 64
          %272 = vsyncadd %s263, %s271
          %s273 = sadd.s32 %s24, %s23
          %s274 = sadd.s32 %s273, %s22
          %s275 = smul.addr %s274, 64
          %s276 = scalar_lea.hbm %s3, %s275
          %s278 = sshll.u32 %s266, 4
          %s279 = int_to_ptr.vmem [resolvable:$true] %s278
          %281 = dma.vmem_to_hbm [thread:$0]  %s279, 64, %s276, %s263
        $region36: #{tpu_custom_call.1} parent=31 // pred_fallthru
          _
      $region32: #{tpu_custom_call.1} parent=5 // pred_fallthru
        _
      %p282 = scmp.le.s32.totalorder 2, %s12
      // Predicated region
      $region37: #{tpu_custom_call.1} parent=5 // pred_check
        %p283 = pneg %p282
      $region38: #{tpu_custom_call.1} parent=5 // pred_check_branch
        %285 = sbr.rel (%p283) target = $region40
      $region39: #{tpu_custom_call.1} parent=5 // pred_region
        %s286 = ssub.s32 %s12, 2
        // Predicated region
        $region41: #{tpu_custom_call.1} parent=39 // pred_check
          %p287 = pneg %p146
        $region42: #{tpu_custom_call.1} parent=39 // pred_check_branch
          %289 = sbr.rel (%p287) target = $region44
        $region43: #{tpu_custom_call.1} parent=39 // pred_region
          %s290 = sand.u32 %s131, 1
          %s291 = scalar_lea.sflag [#allocation3], %s290
          %s292 = sand.u32 %s131, 1
          %s293 = smul.addr %s292, 4
          %s294 = scalar_lea.vmem [#allocation2], %s293
          %295 = dma.done %s291, 64
        $region44: #{tpu_custom_call.1} parent=39 // pred_fallthru
          _
      $region40: #{tpu_custom_call.1} parent=5 // pred_fallthru
        _
    $region6: #{tpu_custom_call.1} parent=1 // loop_footer
      %s16 = sadd.s32 1, %s12
    $region7: #{tpu_custom_call.1} parent=1 // loop_footer_branch
      %11 = sbr.rel target = $region3
    $region8: #{tpu_custom_call.1} parent=1 // loop_exit
      _
    %296 = vsyncpa [#allocation3], 1
    %s297 = scalar_lea.sflag [#allocation3], 1
    %298 = vsyncpa %s297, 1

</llo_original>
